<compile_context>
chip_gen: v5e
topology: v5e:2x2
jax: 0.10.0
libtpu: 0.0.40
codegen_flags: <defaults>
</compile_context>

<pallas_src>
import jax
import jax.numpy as jnp
import numpy as np
from jax import lax
from jax.experimental import pallas as pl
from jax.experimental.pallas import tpu as pltpu


# ---------------------------------------------------------------------------
# Fused kernel: block input projection (parallel MXU) + tanh recurrence.
# ---------------------------------------------------------------------------
def encoder_rnn_kernel(x_ref, wih_ref, whh_ref, b_ref, h0_ref, out_ref, h_scratch):
    tb = pl.program_id(0)

    @pl.when(tb == 0)
    def _():
        h_scratch[...] = h0_ref[...]

    Tt, Bp, Hp = x_ref.shape  # static block shape

    # (1) Input projection for the whole time block: one big MXU matmul,
    #     written straight into the output VMEM block (no extra scratch).
    x2d = x_ref[...].reshape(Tt * Bp, Hp)
    pre = (
        jnp.dot(x2d, wih_ref[...], preferred_element_type=jnp.float32)
        + b_ref[...]
    )
    out_ref[...] = pre.reshape(Tt, Bp, Hp)

    # (2) Sequential recurrence over the Tt steps of this block, in-place.
    whh = whh_ref[...]  # (Hp, Hp), resident in VMEM

    def step(i, h_prev):
        h_new = jnp.tanh(
            out_ref[i]
            + jnp.dot(h_prev, whh, preferred_element_type=jnp.float32)
        )
        out_ref[i] = h_new
        return h_new

    h_last = lax.fori_loop(0, Tt, step, h_scratch[...], unroll=True)
    h_scratch[...] = h_last


def fused_encoder_rnn(x_tm, w_ih_t, w_hh_t, bias, h0, Tt):
    """x_tm: (Sp, Bp, Hp) time-major embedded inputs.  Returns (Sp, Bp, Hp)."""
    Sp, Bp, Hp = x_tm.shape
    grid_spec = pltpu.PrefetchScalarGridSpec(
        num_scalar_prefetch=0,
        grid=(Sp // Tt,),
        in_specs=[
            pl.BlockSpec((Tt, Bp, Hp), lambda t: (t, 0, 0)),  # embedded block
            pl.BlockSpec((Hp, Hp), lambda t: (0, 0)),         # W_ih^T (resident)
            pl.BlockSpec((Hp, Hp), lambda t: (0, 0)),         # W_hh^T (resident)
            pl.BlockSpec((1, Hp), lambda t: (0, 0)),          # b_ih + b_hh
            pl.BlockSpec((Bp, Hp), lambda t: (0, 0)),         # h0
        ],
        out_specs=pl.BlockSpec((Tt, Bp, Hp), lambda t: (t, 0, 0)),
        scratch_shapes=[pltpu.VMEM((Bp, Hp), jnp.float32)],   # carried hidden state
    )
    return pl.pallas_call(
        encoder_rnn_kernel,
        grid_spec=grid_spec,
        out_shape=jax.ShapeDtypeStruct((Sp, Bp, Hp), jnp.float32),
        compiler_params=pltpu.CompilerParams(
            dimension_semantics=("arbitrary",),  # recurrence: must be sequential
        ),
    )(x_tm, w_ih_t, w_hh_t, bias, h0)


# ---------------------------------------------------------------------------
# Wrapper
# ---------------------------------------------------------------------------
def _round_up(x, m):
    return (x + m - 1) // m * m


def _choose_time_block(S, Bp, Hp, budget_bytes=8 << 20, max_unroll=32):
    """Largest time block whose double-buffered in+out blocks fit a VMEM budget,
    capped to keep the unrolled inner loop's code size reasonable."""
    per_step = 4 * Bp * Hp * 4  # in + out blocks, double-buffered, f32
    cap = max(1, budget_bytes // per_step)
    return int(max(1, min(S, cap, max_unroll)))


def encoder_forward(params, inputs, hidden):
    """inputs: (B, S) int32 token ids, hidden: (1, B, H) float32.
    Returns (output (B, S, H), hidden (1, B, H)) — matches PyTorch Encoder.forward."""
    emb_table = params["embedding"]
    w_ih, w_hh = params["w_ih"], params["w_hh"]
    b_ih, b_hh = params["b_ih"], params["b_hh"]

    B, S = inputs.shape
    H = emb_table.shape[1]
    Bp = _round_up(B, 8)      # sublane-dense batch
    Hp = _round_up(H, 128)    # lane-dense hidden

    Tt = _choose_time_block(S, Bp, Hp)
    Sp = _round_up(S, Tt)     # pad time so the block evenly tiles the sequence

    # Embedding gather, directly into time-major (S, B, H) layout.
    # TODO(synk): fuse the gather into the kernel via scalar-prefetched token ids
    # + per-row DMA from the HBM embedding table instead of jnp.take in the wrapper.
    embedded_tm = jnp.take(emb_table, inputs.T, axis=0)                   # (S, B, H)
    embedded_tm = jnp.pad(
        embedded_tm, ((0, Sp - S), (0, Bp - B), (0, Hp - H))
    )                                                                     # (Sp, Bp, Hp)

    # Pad weights/bias/h0; zero padding keeps padded hidden columns exactly zero.
    w_ih_t = jnp.pad(w_ih.T, ((0, Hp - H), (0, Hp - H)))                  # (Hp, Hp)
    w_hh_t = jnp.pad(w_hh.T, ((0, Hp - H), (0, Hp - H)))                  # (Hp, Hp)
    bias = jnp.pad(b_ih + b_hh, ((0, Hp - H),)).reshape(1, Hp)            # (1, Hp)
    h0 = jnp.pad(hidden[0], ((0, Bp - B), (0, Hp - H)))                   # (Bp, Hp)

    # Fused projection + recurrence, time-blocked.
    out_tm = fused_encoder_rnn(embedded_tm, w_ih_t, w_hh_t, bias, h0, Tt)  # (Sp, Bp, Hp)

    # Final hidden = last *real* time step of the output (no extra kernel output).
    h_final = out_tm[S - 1, :B, :H][None, :, :]                           # (1, B, H)
    output = jnp.transpose(out_tm[:S, :B, :H], (1, 0, 2))                 # (B, S, H)
    return output, h_final


# ---------------------------------------------------------------------------
# Pure-JAX reference + init
# ---------------------------------------------------------------------------
def encoder_reference(params, inputs, hidden):
    emb = jnp.take(params["embedding"], inputs, axis=0)  # (B, S, H)
    w_ih, w_hh = params["w_ih"], params["w_hh"]
    b = params["b_ih"] + params["b_hh"]
    h = hidden[0]

    def step(h_prev, x_t):
        h_new = jnp.tanh(x_t @ w_ih.T + h_prev @ w_hh.T + b)
        return h_new, h_new

    hT, outs = lax.scan(step, h, jnp.transpose(emb, (1, 0, 2)))
    return jnp.transpose(outs, (1, 0, 2)), hT[None, :, :]


def init_params(key, input_size, hidden_size):
    """Deterministic, PyTorch-like init: embedding ~ N(0,1), RNN params ~ U(-k, k)."""
    k_emb, k1, k2, k3, k4 = jax.random.split(key, 5)
    k = 1.0 / np.sqrt(hidden_size)
    return {
        "embedding": jax.random.normal(k_emb, (input_size, hidden_size), jnp.float32),
        "w_ih": jax.random.uniform(k1, (hidden_size, hidden_size), jnp.float32, -k, k),
        "w_hh": jax.random.uniform(k2, (hidden_size, hidden_size), jnp.float32, -k, k),
        "b_ih": jax.random.uniform(k3, (hidden_size,), jnp.float32, -k, k),
        "b_hh": jax.random.uniform(k4, (hidden_size,), jnp.float32, -k, k),
    }


if __name__ == "__main__":
    input_size = 16     # vocab size
    hidden_size = 32
    batch = 2
    seq = 8

    key = jax.random.PRNGKey(0)
    kp, ki, kh = jax.random.split(key, 3)

    params = init_params(kp, input_size, hidden_size)
    inputs = jax.random.randint(ki, (batch, seq), 0, input_size, dtype=jnp.int32)
    hidden = jax.random.normal(kh, (1, batch, hidden_size), jnp.float32)

    output, h_final = jax.jit(encoder_forward)(params, inputs, hidden)
    jax.block_until_ready((output, h_final))

    out_ref, h_ref = encoder_reference(params, inputs, hidden)
    assert output.shape == (batch, seq, hidden_size)
    assert h_final.shape == (1, batch, hidden_size)
    np.testing.assert_allclose(np.asarray(output), np.asarray(out_ref), atol=1e-4, rtol=1e-4)
    np.testing.assert_allclose(np.asarray(h_final), np.asarray(h_ref), atol=1e-4, rtol=1e-4)

    print("KERNEL_OK")
</pallas_src>

<mosaic_0001>
module attributes {stable_mosaic.version = 11 : i64} {
  func.func @encoder_rnn_kernel(%arg0: i32, %arg1: memref<8x8x128xf32, #tpu.memory_space<vmem>>, %arg2: memref<128x128xf32, #tpu.memory_space<vmem>>, %arg3: memref<128x128xf32, #tpu.memory_space<vmem>>, %arg4: memref<1x128xf32, #tpu.memory_space<vmem>>, %arg5: memref<8x128xf32, #tpu.memory_space<vmem>>, %arg6: memref<8x8x128xf32, #tpu.memory_space<vmem>>, %arg7: memref<8x128xf32, #tpu.memory_space<vmem>>) attributes {dimension_semantics = [#tpu.dimension_semantics<arbitrary>], iteration_bounds = array<i64: 1>, scalar_prefetch = 0 : i64, scratch_operands = 1 : i64, tpu.core_type = #tpu.core_type<tc>, window_params = [{transform_indices = @transform_0, window_bounds = array<i64: 8, 8, 128>}, {pipeline_mode = #tpu.pipeline_mode<synchronous>, transform_indices = @transform_1, window_bounds = array<i64: 128, 128>}, {pipeline_mode = #tpu.pipeline_mode<synchronous>, transform_indices = @transform_2, window_bounds = array<i64: 128, 128>}, {pipeline_mode = #tpu.pipeline_mode<synchronous>, transform_indices = @transform_3, window_bounds = array<i64: 1, 128>}, {pipeline_mode = #tpu.pipeline_mode<synchronous>, transform_indices = @transform_4, window_bounds = array<i64: 8, 128>}, {transform_indices = @transform_5, window_bounds = array<i64: 8, 8, 128>}]} {
    %c0_i32 = arith.constant 0 : i32
    %0 = arith.cmpi eq, %arg0, %c0_i32 : i32
    %1 = arith.extui %0 : i1 to i32
    %c0_i32_0 = arith.constant 0 : i32
    %2 = arith.cmpi ne, %1, %c0_i32_0 : i32
    scf.if %2 {
      %c0_57 = arith.constant 0 : index
      %c0_58 = arith.constant 0 : index
      %95 = vector.load %arg5[%c0_57, %c0_58] : memref<8x128xf32, #tpu.memory_space<vmem>>, vector<8x128xf32>
      %c0_59 = arith.constant 0 : index
      %c0_60 = arith.constant 0 : index
      %96 = vector.load %arg7[%c0_59, %c0_60] : memref<8x128xf32, #tpu.memory_space<vmem>>, vector<8x128xf32>
      tpu.vector_store %arg7[%c0_59, %c0_60], %95 {strides = array<i32>} : memref<8x128xf32, #tpu.memory_space<vmem>>, vector<8x128xf32>,
    } else {
    }
    %c0 = arith.constant 0 : index
    %c0_1 = arith.constant 0 : index
    %c0_2 = arith.constant 0 : index
    %3 = vector.load %arg1[%c0, %c0_1, %c0_2] : memref<8x8x128xf32, #tpu.memory_space<vmem>>, vector<8x8x128xf32>
    %4 = vector.shape_cast %3 : vector<8x8x128xf32> to vector<64x128xf32>
    %c0_3 = arith.constant 0 : index
    %c0_4 = arith.constant 0 : index
    %5 = vector.load %arg2[%c0_3, %c0_4] : memref<128x128xf32, #tpu.memory_space<vmem>>, vector<128x128xf32>
    %cst = arith.constant dense<0.000000e+00> : vector<64x128xf32>
    %6 = tpu.matmul %4, %5, %cst {dimension_numbers = #tpu.dot_dimension_numbers<[1], [0], [0], [1], [0, 0, 1, 1], [], []>} : vector<64x128xf32>, vector<128x128xf32>, vector<64x128xf32> -> vector<64x128xf32>
    %c0_5 = arith.constant 0 : index
    %c0_6 = arith.constant 0 : index
    %7 = vector.load %arg4[%c0_5, %c0_6] : memref<1x128xf32, #tpu.memory_space<vmem>>, vector<1x128xf32>
    %8 = vector.broadcast %7 : vector<1x128xf32> to vector<64x128xf32>
    %9 = arith.addf %6, %8 : vector<64x128xf32>
    %10 = vector.shape_cast %9 : vector<64x128xf32> to vector<8x8x128xf32>
    %c0_7 = arith.constant 0 : index
    %c0_8 = arith.constant 0 : index
    %c0_9 = arith.constant 0 : index
    %11 = vector.load %arg6[%c0_7, %c0_8, %c0_9] : memref<8x8x128xf32, #tpu.memory_space<vmem>>, vector<8x8x128xf32>
    tpu.vector_store %arg6[%c0_7, %c0_8, %c0_9], %10 {strides = array<i32>} : memref<8x8x128xf32, #tpu.memory_space<vmem>>, vector<8x8x128xf32>,
    %c0_10 = arith.constant 0 : index
    %c0_11 = arith.constant 0 : index
    %12 = vector.load %arg3[%c0_10, %c0_11] : memref<128x128xf32, #tpu.memory_space<vmem>>, vector<128x128xf32>
    %c0_12 = arith.constant 0 : index
    %c0_13 = arith.constant 0 : index
    %13 = vector.load %arg7[%c0_12, %c0_13] : memref<8x128xf32, #tpu.memory_space<vmem>>, vector<8x128xf32>
    %c0_i32_14 = arith.constant 0 : i32
    %14 = arith.index_cast %c0_i32_14 : i32 to index
    %c0_15 = arith.constant 0 : index
    %c0_16 = arith.constant 0 : index
    %15 = vector.load %arg6[%14, %c0_15, %c0_16] : memref<8x8x128xf32, #tpu.memory_space<vmem>>, vector<1x8x128xf32>
    %16 = vector.shape_cast %15 : vector<1x8x128xf32> to vector<8x128xf32>
    %cst_17 = arith.constant dense<0.000000e+00> : vector<8x128xf32>
    %17 = tpu.matmul %13, %12, %cst_17 {dimension_numbers = #tpu.dot_dimension_numbers<[1], [0], [0], [1], [0, 0, 1, 1], [], []>} : vector<8x128xf32>, vector<128x128xf32>, vector<8x128xf32> -> vector<8x128xf32>
    %18 = arith.addf %16, %17 : vector<8x128xf32>
    %19 = math.tanh %18 : vector<8x128xf32>
    %20 = arith.index_cast %c0_i32_14 : i32 to index
    %c0_18 = arith.constant 0 : index
    %c0_19 = arith.constant 0 : index
    %21 = vector.load %arg6[%20, %c0_18, %c0_19] : memref<8x8x128xf32, #tpu.memory_space<vmem>>, vector<1x8x128xf32>
    %22 = vector.shape_cast %21 : vector<1x8x128xf32> to vector<8x128xf32>
    %23 = vector.shape_cast %19 : vector<8x128xf32> to vector<1x8x128xf32>
    tpu.vector_store %arg6[%20, %c0_18, %c0_19], %23 {strides = array<i32>} : memref<8x8x128xf32, #tpu.memory_space<vmem>>, vector<1x8x128xf32>,
    %c1_i32 = arith.constant 1 : i32
    %24 = arith.index_cast %c1_i32 : i32 to index
    %c0_20 = arith.constant 0 : index
    %c0_21 = arith.constant 0 : index
    %25 = vector.load %arg6[%24, %c0_20, %c0_21] : memref<8x8x128xf32, #tpu.memory_space<vmem>>, vector<1x8x128xf32>
    %26 = vector.shape_cast %25 : vector<1x8x128xf32> to vector<8x128xf32>
    %cst_22 = arith.constant dense<0.000000e+00> : vector<8x128xf32>
    %27 = tpu.matmul %19, %12, %cst_22 {dimension_numbers = #tpu.dot_dimension_numbers<[1], [0], [0], [1], [0, 0, 1, 1], [], []>} : vector<8x128xf32>, vector<128x128xf32>, vector<8x128xf32> -> vector<8x128xf32>
    %28 = arith.addf %26, %27 : vector<8x128xf32>
    %29 = math.tanh %28 : vector<8x128xf32>
    %30 = arith.index_cast %c1_i32 : i32 to index
    %c0_23 = arith.constant 0 : index
    %c0_24 = arith.constant 0 : index
    %31 = vector.load %arg6[%30, %c0_23, %c0_24] : memref<8x8x128xf32, #tpu.memory_space<vmem>>, vector<1x8x128xf32>
    %32 = vector.shape_cast %31 : vector<1x8x128xf32> to vector<8x128xf32>
    %33 = vector.shape_cast %29 : vector<8x128xf32> to vector<1x8x128xf32>
    tpu.vector_store %arg6[%30, %c0_23, %c0_24], %33 {strides = array<i32>} : memref<8x8x128xf32, #tpu.memory_space<vmem>>, vector<1x8x128xf32>,
    %c2_i32 = arith.constant 2 : i32
    %34 = arith.index_cast %c2_i32 : i32 to index
    %c0_25 = arith.constant 0 : index
    %c0_26 = arith.constant 0 : index
    %35 = vector.load %arg6[%34, %c0_25, %c0_26] : memref<8x8x128xf32, #tpu.memory_space<vmem>>, vector<1x8x128xf32>
    %36 = vector.shape_cast %35 : vector<1x8x128xf32> to vector<8x128xf32>
    %cst_27 = arith.constant dense<0.000000e+00> : vector<8x128xf32>
    %37 = tpu.matmul %29, %12, %cst_27 {dimension_numbers = #tpu.dot_dimension_numbers<[1], [0], [0], [1], [0, 0, 1, 1], [], []>} : vector<8x128xf32>, vector<128x128xf32>, vector<8x128xf32> -> vector<8x128xf32>
    %38 = arith.addf %36, %37 : vector<8x128xf32>
    %39 = math.tanh %38 : vector<8x128xf32>
    %40 = arith.index_cast %c2_i32 : i32 to index
    %c0_28 = arith.constant 0 : index
    %c0_29 = arith.constant 0 : index
    %41 = vector.load %arg6[%40, %c0_28, %c0_29] : memref<8x8x128xf32, #tpu.memory_space<vmem>>, vector<1x8x128xf32>
    %42 = vector.shape_cast %41 : vector<1x8x128xf32> to vector<8x128xf32>
    %43 = vector.shape_cast %39 : vector<8x128xf32> to vector<1x8x128xf32>
    tpu.vector_store %arg6[%40, %c0_28, %c0_29], %43 {strides = array<i32>} : memref<8x8x128xf32, #tpu.memory_space<vmem>>, vector<1x8x128xf32>,
    %c3_i32 = arith.constant 3 : i32
    %44 = arith.index_cast %c3_i32 : i32 to index
    %c0_30 = arith.constant 0 : index
    %c0_31 = arith.constant 0 : index
    %45 = vector.load %arg6[%44, %c0_30, %c0_31] : memref<8x8x128xf32, #tpu.memory_space<vmem>>, vector<1x8x128xf32>
    %46 = vector.shape_cast %45 : vector<1x8x128xf32> to vector<8x128xf32>
    %cst_32 = arith.constant dense<0.000000e+00> : vector<8x128xf32>
    %47 = tpu.matmul %39, %12, %cst_32 {dimension_numbers = #tpu.dot_dimension_numbers<[1], [0], [0], [1], [0, 0, 1, 1], [], []>} : vector<8x128xf32>, vector<128x128xf32>, vector<8x128xf32> -> vector<8x128xf32>
    %48 = arith.addf %46, %47 : vector<8x128xf32>
    %49 = math.tanh %48 : vector<8x128xf32>
    %50 = arith.index_cast %c3_i32 : i32 to index
    %c0_33 = arith.constant 0 : index
    %c0_34 = arith.constant 0 : index
    %51 = vector.load %arg6[%50, %c0_33, %c0_34] : memref<8x8x128xf32, #tpu.memory_space<vmem>>, vector<1x8x128xf32>
    %52 = vector.shape_cast %51 : vector<1x8x128xf32> to vector<8x128xf32>
    %53 = vector.shape_cast %49 : vector<8x128xf32> to vector<1x8x128xf32>
    tpu.vector_store %arg6[%50, %c0_33, %c0_34], %53 {strides = array<i32>} : memref<8x8x128xf32, #tpu.memory_space<vmem>>, vector<1x8x128xf32>,
    %c4_i32 = arith.constant 4 : i32
    %54 = arith.index_cast %c4_i32 : i32 to index
    %c0_35 = arith.constant 0 : index
    %c0_36 = arith.constant 0 : index
    %55 = vector.load %arg6[%54, %c0_35, %c0_36] : memref<8x8x128xf32, #tpu.memory_space<vmem>>, vector<1x8x128xf32>
    %56 = vector.shape_cast %55 : vector<1x8x128xf32> to vector<8x128xf32>
    %cst_37 = arith.constant dense<0.000000e+00> : vector<8x128xf32>
    %57 = tpu.matmul %49, %12, %cst_37 {dimension_numbers = #tpu.dot_dimension_numbers<[1], [0], [0], [1], [0, 0, 1, 1], [], []>} : vector<8x128xf32>, vector<128x128xf32>, vector<8x128xf32> -> vector<8x128xf32>
    %58 = arith.addf %56, %57 : vector<8x128xf32>
    %59 = math.tanh %58 : vector<8x128xf32>
    %60 = arith.index_cast %c4_i32 : i32 to index
    %c0_38 = arith.constant 0 : index
    %c0_39 = arith.constant 0 : index
    %61 = vector.load %arg6[%60, %c0_38, %c0_39] : memref<8x8x128xf32, #tpu.memory_space<vmem>>, vector<1x8x128xf32>
    %62 = vector.shape_cast %61 : vector<1x8x128xf32> to vector<8x128xf32>
    %63 = vector.shape_cast %59 : vector<8x128xf32> to vector<1x8x128xf32>
    tpu.vector_store %arg6[%60, %c0_38, %c0_39], %63 {strides = array<i32>} : memref<8x8x128xf32, #tpu.memory_space<vmem>>, vector<1x8x128xf32>,
    %c5_i32 = arith.constant 5 : i32
    %64 = arith.index_cast %c5_i32 : i32 to index
    %c0_40 = arith.constant 0 : index
    %c0_41 = arith.constant 0 : index
    %65 = vector.load %arg6[%64, %c0_40, %c0_41] : memref<8x8x128xf32, #tpu.memory_space<vmem>>, vector<1x8x128xf32>
    %66 = vector.shape_cast %65 : vector<1x8x128xf32> to vector<8x128xf32>
    %cst_42 = arith.constant dense<0.000000e+00> : vector<8x128xf32>
    %67 = tpu.matmul %59, %12, %cst_42 {dimension_numbers = #tpu.dot_dimension_numbers<[1], [0], [0], [1], [0, 0, 1, 1], [], []>} : vector<8x128xf32>, vector<128x128xf32>, vector<8x128xf32> -> vector<8x128xf32>
    %68 = arith.addf %66, %67 : vector<8x128xf32>
    %69 = math.tanh %68 : vector<8x128xf32>
    %70 = arith.index_cast %c5_i32 : i32 to index
    %c0_43 = arith.constant 0 : index
    %c0_44 = arith.constant 0 : index
    %71 = vector.load %arg6[%70, %c0_43, %c0_44] : memref<8x8x128xf32, #tpu.memory_space<vmem>>, vector<1x8x128xf32>
    %72 = vector.shape_cast %71 : vector<1x8x128xf32> to vector<8x128xf32>
    %73 = vector.shape_cast %69 : vector<8x128xf32> to vector<1x8x128xf32>
    tpu.vector_store %arg6[%70, %c0_43, %c0_44], %73 {strides = array<i32>} : memref<8x8x128xf32, #tpu.memory_space<vmem>>, vector<1x8x128xf32>,
    %c6_i32 = arith.constant 6 : i32
    %74 = arith.index_cast %c6_i32 : i32 to index
    %c0_45 = arith.constant 0 : index
    %c0_46 = arith.constant 0 : index
    %75 = vector.load %arg6[%74, %c0_45, %c0_46] : memref<8x8x128xf32, #tpu.memory_space<vmem>>, vector<1x8x128xf32>
    %76 = vector.shape_cast %75 : vector<1x8x128xf32> to vector<8x128xf32>
    %cst_47 = arith.constant dense<0.000000e+00> : vector<8x128xf32>
    %77 = tpu.matmul %69, %12, %cst_47 {dimension_numbers = #tpu.dot_dimension_numbers<[1], [0], [0], [1], [0, 0, 1, 1], [], []>} : vector<8x128xf32>, vector<128x128xf32>, vector<8x128xf32> -> vector<8x128xf32>
    %78 = arith.addf %76, %77 : vector<8x128xf32>
    %79 = math.tanh %78 : vector<8x128xf32>
    %80 = arith.index_cast %c6_i32 : i32 to index
    %c0_48 = arith.constant 0 : index
    %c0_49 = arith.constant 0 : index
    %81 = vector.load %arg6[%80, %c0_48, %c0_49] : memref<8x8x128xf32, #tpu.memory_space<vmem>>, vector<1x8x128xf32>
    %82 = vector.shape_cast %81 : vector<1x8x128xf32> to vector<8x128xf32>
    %83 = vector.shape_cast %79 : vector<8x128xf32> to vector<1x8x128xf32>
    tpu.vector_store %arg6[%80, %c0_48, %c0_49], %83 {strides = array<i32>} : memref<8x8x128xf32, #tpu.memory_space<vmem>>, vector<1x8x128xf32>,
    %c7_i32 = arith.constant 7 : i32
    %84 = arith.index_cast %c7_i32 : i32 to index
    %c0_50 = arith.constant 0 : index
    %c0_51 = arith.constant 0 : index
    %85 = vector.load %arg6[%84, %c0_50, %c0_51] : memref<8x8x128xf32, #tpu.memory_space<vmem>>, vector<1x8x128xf32>
    %86 = vector.shape_cast %85 : vector<1x8x128xf32> to vector<8x128xf32>
    %cst_52 = arith.constant dense<0.000000e+00> : vector<8x128xf32>
    %87 = tpu.matmul %79, %12, %cst_52 {dimension_numbers = #tpu.dot_dimension_numbers<[1], [0], [0], [1], [0, 0, 1, 1], [], []>} : vector<8x128xf32>, vector<128x128xf32>, vector<8x128xf32> -> vector<8x128xf32>
    %88 = arith.addf %86, %87 : vector<8x128xf32>
    %89 = math.tanh %88 : vector<8x128xf32>
    %90 = arith.index_cast %c7_i32 : i32 to index
    %c0_53 = arith.constant 0 : index
    %c0_54 = arith.constant 0 : index
    %91 = vector.load %arg6[%90, %c0_53, %c0_54] : memref<8x8x128xf32, #tpu.memory_space<vmem>>, vector<1x8x128xf32>
    %92 = vector.shape_cast %91 : vector<1x8x128xf32> to vector<8x128xf32>
    %93 = vector.shape_cast %89 : vector<8x128xf32> to vector<1x8x128xf32>
    tpu.vector_store %arg6[%90, %c0_53, %c0_54], %93 {strides = array<i32>} : memref<8x8x128xf32, #tpu.memory_space<vmem>>, vector<1x8x128xf32>,
    %c8_i32 = arith.constant 8 : i32
    %c0_55 = arith.constant 0 : index
    %c0_56 = arith.constant 0 : index
    %94 = vector.load %arg7[%c0_55, %c0_56] : memref<8x128xf32, #tpu.memory_space<vmem>>, vector<8x128xf32>
    tpu.vector_store %arg7[%c0_55, %c0_56], %89 {strides = array<i32>} : memref<8x128xf32, #tpu.memory_space<vmem>>, vector<8x128xf32>,
    return
  }
  func.func @transform_0(%arg0: i32) -> (i32, i32, i32) {
    %c0_i32 = arith.constant 0 : i32
    %c0_i32_0 = arith.constant 0 : i32
    %c0_i32_1 = arith.constant 0 : i32
    return %arg0, %c0_i32, %c0_i32_0 : i32, i32, i32
  }
  func.func @transform_1(%arg0: i32) -> (i32, i32) {
    %c0_i32 = arith.constant 0 : i32
    %c0_i32_0 = arith.constant 0 : i32
    %c0_i32_1 = arith.constant 0 : i32
    return %c0_i32, %c0_i32_0 : i32, i32
  }
  func.func @transform_2(%arg0: i32) -> (i32, i32) {
    %c0_i32 = arith.constant 0 : i32
    %c0_i32_0 = arith.constant 0 : i32
    %c0_i32_1 = arith.constant 0 : i32
    return %c0_i32, %c0_i32_0 : i32, i32
  }
  func.func @transform_3(%arg0: i32) -> (i32, i32) {
    %c0_i32 = arith.constant 0 : i32
    %c0_i32_0 = arith.constant 0 : i32
    %c0_i32_1 = arith.constant 0 : i32
    return %c0_i32, %c0_i32_0 : i32, i32
  }
  func.func @transform_4(%arg0: i32) -> (i32, i32) {
    %c0_i32 = arith.constant 0 : i32
    %c0_i32_0 = arith.constant 0 : i32
    %c0_i32_1 = arith.constant 0 : i32
    return %c0_i32, %c0_i32_0 : i32, i32
  }
  func.func @transform_5(%arg0: i32) -> (i32, i32, i32) {
    %c0_i32 = arith.constant 0 : i32
    %c0_i32_0 = arith.constant 0 : i32
    %c0_i32_1 = arith.constant 0 : i32
    return %arg0, %c0_i32, %c0_i32_0 : i32, i32, i32
  }
}

</mosaic_0001>

<llo_original>
// kernel: encoder_forward.1
$region0: #{encoder_forward.1}
  #allocation0 [shape = 'u32[]', space=smem, size = 0x4, offset = 0x4, fixed_abs, tag = 'smem constant byte address 0x4 - core index']
  #allocation1 [shape = 'u32[72,128]{1,0:T(1,128)}', space=vmem, size = 0x9000, scoped, tag = 'internal scratch']
  #allocation2 [shape = 'f32[8,128]{1,0:T(8,128)}', space=vmem, size = 0x1000, scoped, tag = 'scratch operand']
  %s0 = inlined_call_operand.vmem [shape: f32[8,8,128], index: 0, kind: input, shape index: {}]
  %s1 = inlined_call_operand.vmem [shape: f32[128,128], index: 1, kind: input, shape index: {}]
  %s2 = inlined_call_operand.vmem [shape: f32[128,128], index: 2, kind: input, shape index: {}]
  %s3 = inlined_call_operand.vmem [shape: f32[1,128], index: 3, kind: input, shape index: {}]
  %s4 = inlined_call_operand.vmem [shape: f32[8,128], index: 4, kind: input, shape index: {}]
  %s5 = inlined_call_operand.vmem [shape: f32[8,8,128], index: 5, kind: output, shape index: {}]
  %s6 = sld [smem:[#allocation0]]
  $region34: #{encoder_forward.1} parent=0
    _
  %s8 = ssub.s32 1, %s6
  %s9 = scalar_select 0, %s8, %s6
  // Predicated region
  $region2: #{encoder_forward.1} parent=0 // pred_check
    _
  $region3: #{encoder_forward.1} parent=0 // pred_check_branch
    %11 = sbr.rel (0) target = $region5
  $region4: #{encoder_forward.1} parent=0 // pred_region
    _
  $region5: #{encoder_forward.1} parent=0 // pred_fallthru
    _
  // Predicated region
  $region6: #{encoder_forward.1} parent=0 // pred_check
    _
  $region7: #{encoder_forward.1} parent=0 // pred_check_branch
    %13 = sbr.rel (0) target = $region9
  $region8: #{encoder_forward.1} parent=0 // pred_region
    _
  $region9: #{encoder_forward.1} parent=0 // pred_fallthru
    _
  // Predicated region
  $region10: #{encoder_forward.1} parent=0 // pred_check
    _
  $region11: #{encoder_forward.1} parent=0 // pred_check_branch
    %15 = sbr.rel (0) target = $region13
  $region12: #{encoder_forward.1} parent=0 // pred_region
    _
  $region13: #{encoder_forward.1} parent=0 // pred_fallthru
    _
  // Predicated region
  $region14: #{encoder_forward.1} parent=0 // pred_check
    _
  $region15: #{encoder_forward.1} parent=0 // pred_check_branch
    %17 = sbr.rel (0) target = $region17
  $region16: #{encoder_forward.1} parent=0 // pred_region
    _
  $region17: #{encoder_forward.1} parent=0 // pred_fallthru
    _
  // Predicated region
  $region18: #{encoder_forward.1} parent=0 // pred_check
    _
  $region19: #{encoder_forward.1} parent=0 // pred_check_branch
    %19 = sbr.rel (0) target = $region21
  $region20: #{encoder_forward.1} parent=0 // pred_region
    _
  $region21: #{encoder_forward.1} parent=0 // pred_fallthru
    _
  %p20 = scmp.eq.s32.totalorder 0, 0
  // Predicated region
  $region22: #{encoder_forward.1} parent=0 // pred_check
    %p21 = pneg %p20
  $region23: #{encoder_forward.1} parent=0 // pred_check_branch
    %23 = sbr.rel (%p21) target = $region25
  $region24: #{encoder_forward.1} parent=0 // pred_region
    %v24 = vld [vmem:[%s4] sm:$0xff]
    %25 = vst [vmem:[#allocation2] sm:$0xff] %v24
  $region25: #{encoder_forward.1} parent=0 // pred_fallthru
    _
  %v26 = vld [vmem:[%s0] sm:$0xff]
  %v27 = vld [vmem:[%s0 + $0x8] sm:$0xff]
  %v28 = vld [vmem:[%s0 + $0x10] sm:$0xff]
  %v29 = vld [vmem:[%s0 + $0x18] sm:$0xff]
  %v30 = vld [vmem:[%s0 + $0x20] sm:$0xff]
  %v31 = vld [vmem:[%s0 + $0x28] sm:$0xff]
  %v32 = vld [vmem:[%s0 + $0x30] sm:$0xff]
  %v33 = vld [vmem:[%s0 + $0x38] sm:$0xff]
  %v34 = vld [vmem:[%s1] sm:$0xff]
  %v35 = vld [vmem:[%s1 + $0x8] sm:$0xff]
  %v36 = vld [vmem:[%s1 + $0x10] sm:$0xff]
  %v37 = vld [vmem:[%s1 + $0x18] sm:$0xff]
  %v38 = vld [vmem:[%s1 + $0x20] sm:$0xff]
  %v39 = vld [vmem:[%s1 + $0x28] sm:$0xff]
  %v40 = vld [vmem:[%s1 + $0x30] sm:$0xff]
  %v41 = vld [vmem:[%s1 + $0x38] sm:$0xff]
  %v42 = vld [vmem:[%s1 + $0x40] sm:$0xff]
  %v43 = vld [vmem:[%s1 + $0x48] sm:$0xff]
  %v44 = vld [vmem:[%s1 + $0x50] sm:$0xff]
  %v45 = vld [vmem:[%s1 + $0x58] sm:$0xff]
  %v46 = vld [vmem:[%s1 + $0x60] sm:$0xff]
  %v47 = vld [vmem:[%s1 + $0x68] sm:$0xff]
  %v48 = vld [vmem:[%s1 + $0x70] sm:$0xff]
  %v49 = vld [vmem:[%s1 + $0x78] sm:$0xff]
  %v50 = vld [vmem:[%s3] sm:$0x1]
  %v52 = vperm.slane %v50, 0
  %54 = vmatpush.msra.mxu0 %v49
  %55 = vmatpush.msra.mxu0 %v48
  %56 = vmatpush.msra.mxu0 %v47
  %57 = vmatpush.msra.mxu0 %v46
  %58 = vmatpush.msra.mxu0 %v45
  %59 = vmatpush.msra.mxu0 %v44
  %60 = vmatpush.msra.mxu0 %v43
  %61 = vmatpush.msra.mxu0 %v42
  %62 = vmatpush.msra.mxu0 %v41
  %63 = vmatpush.msra.mxu0 %v40
  %64 = vmatpush.msra.mxu0 %v39
  %65 = vmatpush.msra.mxu0 %v38
  %66 = vmatpush.msra.mxu0 %v37
  %67 = vmatpush.msra.mxu0 %v36
  %68 = vmatpush.msra.mxu0 %v35
  %69 = vmatpush.msra.mxu0 %v34
  %70 = vmatmul.f32.gmra.mxu0 %v26
  %v71 = vpop.f32.mrf.mxu0
  %v72 = vadd.f32 %v52, %v71
  %73 = vmatmul.f32.gmra.mxu0 %v27
  %v74 = vpop.f32.mrf.mxu0
  %v75 = vadd.f32 %v52, %v74
  %76 = vmatmul.f32.gmra.mxu0 %v28
  %v77 = vpop.f32.mrf.mxu0
  %v78 = vadd.f32 %v52, %v77
  %79 = vmatmul.f32.gmra.mxu0 %v29
  %v80 = vpop.f32.mrf.mxu0
  %v81 = vadd.f32 %v52, %v80
  %82 = vmatmul.f32.gmra.mxu0 %v30
  %v83 = vpop.f32.mrf.mxu0
  %v84 = vadd.f32 %v52, %v83
  %85 = vmatmul.f32.gmra.mxu0 %v31
  %v86 = vpop.f32.mrf.mxu0
  %v87 = vadd.f32 %v52, %v86
  %88 = vmatmul.f32.gmra.mxu0 %v32
  %v89 = vpop.f32.mrf.mxu0
  %v90 = vadd.f32 %v52, %v89
  %91 = vmatmul.f32.gmra.mxu0 %v33
  %v92 = vpop.f32.mrf.mxu0
  %v93 = vadd.f32 %v52, %v92
  %94 = vdwg.mxu0
  %95 = vst [vmem:[%s5] sm:$0xff] %v72
  %96 = vst [vmem:[%s5 + $0x8] sm:$0xff] %v75
  %97 = vst [vmem:[%s5 + $0x10] sm:$0xff] %v78
  %98 = vst [vmem:[%s5 + $0x18] sm:$0xff] %v81
  %99 = vst [vmem:[%s5 + $0x20] sm:$0xff] %v84
  %100 = vst [vmem:[%s5 + $0x28] sm:$0xff] %v87
  %101 = vst [vmem:[%s5 + $0x30] sm:$0xff] %v90
  %102 = vst [vmem:[%s5 + $0x38] sm:$0xff] %v93
  %v103 = vld [vmem:[%s2] sm:$0xff]
  %v104 = vld [vmem:[%s2 + $0x8] sm:$0xff]
  %v105 = vld [vmem:[%s2 + $0x10] sm:$0xff]
  %v106 = vld [vmem:[%s2 + $0x18] sm:$0xff]
  %v107 = vld [vmem:[%s2 + $0x20] sm:$0xff]
  %v108 = vld [vmem:[%s2 + $0x28] sm:$0xff]
  %v109 = vld [vmem:[%s2 + $0x30] sm:$0xff]
  %v110 = vld [vmem:[%s2 + $0x38] sm:$0xff]
  %v111 = vld [vmem:[%s2 + $0x40] sm:$0xff]
  %v112 = vld [vmem:[%s2 + $0x48] sm:$0xff]
  %v113 = vld [vmem:[%s2 + $0x50] sm:$0xff]
  %v114 = vld [vmem:[%s2 + $0x58] sm:$0xff]
  %v115 = vld [vmem:[%s2 + $0x60] sm:$0xff]
  %v116 = vld [vmem:[%s2 + $0x68] sm:$0xff]
  %v117 = vld [vmem:[%s2 + $0x70] sm:$0xff]
  %v118 = vld [vmem:[%s2 + $0x78] sm:$0xff]
  %v119 = vld [vmem:[#allocation2] sm:$0xff]
  %v120 = vld [vmem:[%s5] sm:$0xff]
  %121 = vmatpush.msra.mxu0 %v118
  %122 = vmatpush.msra.mxu0 %v117
  %123 = vmatpush.msra.mxu0 %v116
  %124 = vmatpush.msra.mxu0 %v115
  %125 = vmatpush.msra.mxu0 %v114
  %126 = vmatpush.msra.mxu0 %v113
  %127 = vmatpush.msra.mxu0 %v112
  %128 = vmatpush.msra.mxu0 %v111
  %129 = vmatpush.msra.mxu0 %v110
  %130 = vmatpush.msra.mxu0 %v109
  %131 = vmatpush.msra.mxu0 %v108
  %132 = vmatpush.msra.mxu0 %v107
  %133 = vmatpush.msra.mxu0 %v106
  %134 = vmatpush.msra.mxu0 %v105
  %135 = vmatpush.msra.mxu0 %v104
  %136 = vmatpush.msra.mxu0 %v103
  %137 = vmatmul.f32.gmra.mxu0 %v119
  %v138 = vpop.f32.mrf.mxu0
  %v139 = vadd.f32 0.0, %v138
  %140 = vdwg.mxu0
  %v141 = vadd.f32 %v120, %v139
  %v142 = vtanh.pop %v141
  %143 = vst [vmem:[%s5] sm:$0xff] %v142
  %s144 = scalar_lea.vmem %s5, 8
  %v145 = vld [vmem:[%s144] sm:$0xff]
  %146 = vmatpush.msra.mxu0 %v118
  %147 = vmatpush.msra.mxu0 %v117
  %148 = vmatpush.msra.mxu0 %v116
  %149 = vmatpush.msra.mxu0 %v115
  %150 = vmatpush.msra.mxu0 %v114
  %151 = vmatpush.msra.mxu0 %v113
  %152 = vmatpush.msra.mxu0 %v112
  %153 = vmatpush.msra.mxu0 %v111
  %154 = vmatpush.msra.mxu0 %v110
  %155 = vmatpush.msra.mxu0 %v109
  %156 = vmatpush.msra.mxu0 %v108
  %157 = vmatpush.msra.mxu0 %v107
  %158 = vmatpush.msra.mxu0 %v106
  %159 = vmatpush.msra.mxu0 %v105
  %160 = vmatpush.msra.mxu0 %v104
  %161 = vmatpush.msra.mxu0 %v103
  %162 = vmatmul.f32.gmra.mxu0 %v142
  %v163 = vpop.f32.mrf.mxu0
  %v164 = vadd.f32 0.0, %v163
  %165 = vdwg.mxu0
  %v166 = vadd.f32 %v145, %v164
  %v167 = vtanh.pop %v166
  %168 = vst [vmem:[%s144] sm:$0xff] %v167
  %s169 = scalar_lea.vmem %s5, 16
  %v170 = vld [vmem:[%s169] sm:$0xff]
  %171 = vmatpush.msra.mxu0 %v118
  %172 = vmatpush.msra.mxu0 %v117
  %173 = vmatpush.msra.mxu0 %v116
  %174 = vmatpush.msra.mxu0 %v115
  %175 = vmatpush.msra.mxu0 %v114
  %176 = vmatpush.msra.mxu0 %v113
  %177 = vmatpush.msra.mxu0 %v112
  %178 = vmatpush.msra.mxu0 %v111
  %179 = vmatpush.msra.mxu0 %v110
  %180 = vmatpush.msra.mxu0 %v109
  %181 = vmatpush.msra.mxu0 %v108
  %182 = vmatpush.msra.mxu0 %v107
  %183 = vmatpush.msra.mxu0 %v106
  %184 = vmatpush.msra.mxu0 %v105
  %185 = vmatpush.msra.mxu0 %v104
  %186 = vmatpush.msra.mxu0 %v103
  %187 = vmatmul.f32.gmra.mxu0 %v167
  %v188 = vpop.f32.mrf.mxu0
  %v189 = vadd.f32 0.0, %v188
  %190 = vdwg.mxu0
  %v191 = vadd.f32 %v170, %v189
  %v192 = vtanh.pop %v191
  %193 = vst [vmem:[%s169] sm:$0xff] %v192
  %s194 = scalar_lea.vmem %s5, 24
  %v195 = vld [vmem:[%s194] sm:$0xff]
  %196 = vmatpush.msra.mxu0 %v118
  %197 = vmatpush.msra.mxu0 %v117
  %198 = vmatpush.msra.mxu0 %v116
  %199 = vmatpush.msra.mxu0 %v115
  %200 = vmatpush.msra.mxu0 %v114
  %201 = vmatpush.msra.mxu0 %v113
  %202 = vmatpush.msra.mxu0 %v112
  %203 = vmatpush.msra.mxu0 %v111
  %204 = vmatpush.msra.mxu0 %v110
  %205 = vmatpush.msra.mxu0 %v109
  %206 = vmatpush.msra.mxu0 %v108
  %207 = vmatpush.msra.mxu0 %v107
  %208 = vmatpush.msra.mxu0 %v106
  %209 = vmatpush.msra.mxu0 %v105
  %210 = vmatpush.msra.mxu0 %v104
  %211 = vmatpush.msra.mxu0 %v103
  %212 = vmatmul.f32.gmra.mxu0 %v192
  %v213 = vpop.f32.mrf.mxu0
  %v214 = vadd.f32 0.0, %v213
  %215 = vdwg.mxu0
  %v216 = vadd.f32 %v195, %v214
  %v217 = vtanh.pop %v216
  %218 = vst [vmem:[%s194] sm:$0xff] %v217
  %s219 = scalar_lea.vmem %s5, 32
  %v220 = vld [vmem:[%s219] sm:$0xff]
  %221 = vmatpush.msra.mxu0 %v118
  %222 = vmatpush.msra.mxu0 %v117
  %223 = vmatpush.msra.mxu0 %v116
  %224 = vmatpush.msra.mxu0 %v115
  %225 = vmatpush.msra.mxu0 %v114
  %226 = vmatpush.msra.mxu0 %v113
  %227 = vmatpush.msra.mxu0 %v112
  %228 = vmatpush.msra.mxu0 %v111
  %229 = vmatpush.msra.mxu0 %v110
  %230 = vmatpush.msra.mxu0 %v109
  %231 = vmatpush.msra.mxu0 %v108
  %232 = vmatpush.msra.mxu0 %v107
  %233 = vmatpush.msra.mxu0 %v106
  %234 = vmatpush.msra.mxu0 %v105
  %235 = vmatpush.msra.mxu0 %v104
  %236 = vmatpush.msra.mxu0 %v103
  %237 = vmatmul.f32.gmra.mxu0 %v217
  %v238 = vpop.f32.mrf.mxu0
  %v239 = vadd.f32 0.0, %v238
  %240 = vdwg.mxu0
  %v241 = vadd.f32 %v220, %v239
  %v242 = vtanh.pop %v241
  %243 = vst [vmem:[%s219] sm:$0xff] %v242
  %s244 = scalar_lea.vmem %s5, 40
  %v245 = vld [vmem:[%s244] sm:$0xff]
  %246 = vmatpush.msra.mxu0 %v118
  %247 = vmatpush.msra.mxu0 %v117
  %248 = vmatpush.msra.mxu0 %v116
  %249 = vmatpush.msra.mxu0 %v115
  %250 = vmatpush.msra.mxu0 %v114
  %251 = vmatpush.msra.mxu0 %v113
  %252 = vmatpush.msra.mxu0 %v112
  %253 = vmatpush.msra.mxu0 %v111
  %254 = vmatpush.msra.mxu0 %v110
  %255 = vmatpush.msra.mxu0 %v109
  %256 = vmatpush.msra.mxu0 %v108
  %257 = vmatpush.msra.mxu0 %v107
  %258 = vmatpush.msra.mxu0 %v106
  %259 = vmatpush.msra.mxu0 %v105
  %260 = vmatpush.msra.mxu0 %v104
  %261 = vmatpush.msra.mxu0 %v103
  %262 = vmatmul.f32.gmra.mxu0 %v242
  %v263 = vpop.f32.mrf.mxu0
  %v264 = vadd.f32 0.0, %v263
  %265 = vdwg.mxu0
  %v266 = vadd.f32 %v245, %v264
  %v267 = vtanh.pop %v266
  %268 = vst [vmem:[%s244] sm:$0xff] %v267
  %s269 = scalar_lea.vmem %s5, 48
  %v270 = vld [vmem:[%s269] sm:$0xff]
  %271 = vmatpush.msra.mxu0 %v118
  %272 = vmatpush.msra.mxu0 %v117
  %273 = vmatpush.msra.mxu0 %v116
  %274 = vmatpush.msra.mxu0 %v115
  %275 = vmatpush.msra.mxu0 %v114
  %276 = vmatpush.msra.mxu0 %v113
  %277 = vmatpush.msra.mxu0 %v112
  %278 = vmatpush.msra.mxu0 %v111
  %279 = vmatpush.msra.mxu0 %v110
  %280 = vmatpush.msra.mxu0 %v109
  %281 = vmatpush.msra.mxu0 %v108
  %282 = vmatpush.msra.mxu0 %v107
  %283 = vmatpush.msra.mxu0 %v106
  %284 = vmatpush.msra.mxu0 %v105
  %285 = vmatpush.msra.mxu0 %v104
  %286 = vmatpush.msra.mxu0 %v103
  %287 = vmatmul.f32.gmra.mxu0 %v267
  %v288 = vpop.f32.mrf.mxu0
  %v289 = vadd.f32 0.0, %v288
  %290 = vdwg.mxu0
  %v291 = vadd.f32 %v270, %v289
  %v292 = vtanh.pop %v291
  %293 = vst [vmem:[%s269] sm:$0xff] %v292
  %s294 = scalar_lea.vmem %s5, 56
  %v295 = vld [vmem:[%s294] sm:$0xff]
  %296 = vmatpush.msra.mxu0 %v118
  %297 = vmatpush.msra.mxu0 %v117
  %298 = vmatpush.msra.mxu0 %v116
  %299 = vmatpush.msra.mxu0 %v115
  %300 = vmatpush.msra.mxu0 %v114
  %301 = vmatpush.msra.mxu0 %v113
  %302 = vmatpush.msra.mxu0 %v112
  %303 = vmatpush.msra.mxu0 %v111
  %304 = vmatpush.msra.mxu0 %v110
  %305 = vmatpush.msra.mxu0 %v109
  %306 = vmatpush.msra.mxu0 %v108
  %307 = vmatpush.msra.mxu0 %v107
  %308 = vmatpush.msra.mxu0 %v106
  %309 = vmatpush.msra.mxu0 %v105
  %310 = vmatpush.msra.mxu0 %v104
  %311 = vmatpush.msra.mxu0 %v103
  %312 = vmatmul.f32.gmra.mxu0 %v292
  %v313 = vpop.f32.mrf.mxu0
  %v314 = vadd.f32 0.0, %v313
  %315 = vdwg.mxu0
  %v316 = vadd.f32 %v295, %v314
  %v317 = vtanh.pop %v316
  %318 = vst [vmem:[%s294] sm:$0xff] %v317
  %319 = vst [vmem:[#allocation2] sm:$0xff] %v317
  // Predicated region
  $region26: #{encoder_forward.1} parent=0 // pred_check
    _
  $region27: #{encoder_forward.1} parent=0 // pred_check_branch
    %321 = sbr.rel (0) target = $region29
  $region28: #{encoder_forward.1} parent=0 // pred_region
    _
  $region29: #{encoder_forward.1} parent=0 // pred_fallthru
    _
  // Predicated region
  $region30: #{encoder_forward.1} parent=0 // pred_check
    _
  $region31: #{encoder_forward.1} parent=0 // pred_check_branch
    %323 = sbr.rel (0) target = $region33
  $region32: #{encoder_forward.1} parent=0 // pred_region
    _
  $region33: #{encoder_forward.1} parent=0 // pred_fallthru
    _

</llo_original>
